<compile_context>
chip_gen: v6e
topology: v6e:2x2x1
jax: 0.10.0
libtpu: 0.0.40
codegen_flags: <defaults>
</compile_context>

<pallas_src>
import numpy as np
import jax
import jax.numpy as jnp
from jax.experimental import pallas as pl
from jax.experimental.pallas import tpu as pltpu

D_PAD = 128        # hidden dim padded to full lane width
V_PAD = 128        # vocab dim padded to full lane width (lane-dense stores)
NEG_BIG = -1e30    # bias for padded vocab classes: ~0 softmax mass, never argmax


def _round_up(x, m):
    return ((x + m - 1) // m) * m


# ----------------------------- Pallas kernel -------------------------------
def _slr_forward_kernel(x_ref, w1_ref, b1_ref, w2_ref, b2_ref, logp_ref):
    # x_ref:  (TM, F)        f32 flattened video frames (streamed from HBM)
    # w1_ref: (F, D_PAD)     bf16 frame feature projection (zero-padded cols)
    # w2_ref: (D_PAD, V_PAD) bf16 classifier (zero-padded rows/cols)
    # b1/b2:  (1, D_PAD)/(1, V_PAD) f32 (padded vocab biases = NEG_BIG)
    # logp:   (TM, V_PAD)    bf16 log-probabilities
    #
    # Cast f32 -> bf16 inside VMEM: no separate HBM convert pass for x.
    x = x_ref[...].astype(jnp.bfloat16)

    # backbone "encoder": linear -> ReLU (f32 accumulation on the MXU)
    h = jnp.dot(x, w1_ref[...], preferred_element_type=jnp.float32) + b1_ref[...]
    h = jnp.maximum(h, 0.0)

    # classifier head -> logits over the (padded) vocab
    logits = jnp.dot(h.astype(w2_ref.dtype), w2_ref[...],
                     preferred_element_type=jnp.float32) + b2_ref[...]

    # numerically stable log_softmax over the class (lane) axis; padded
    # classes sit at ~-1e30 and contribute ~0 to the sum.
    m = jnp.max(logits, axis=-1, keepdims=True)
    z = logits - m
    lse = jnp.log(jnp.sum(jnp.exp(z), axis=-1, keepdims=True))
    logp_ref[...] = (z - lse).astype(logp_ref.dtype)


# --------------------------- tile-size selection ----------------------------
def _row_tile_cap():
    """Per-generation cap on the row tile: 2048 (v6e/v7x), 1024 on v5e."""
    cap = 2048
    try:
        info = pltpu.get_tpu_info()
        name = str(getattr(info, "chip_version", "")).lower()
        if "5" in name:          # v5e: 0.82 TB/s HBM already hides step overhead
            cap = 1024
    except Exception:
        pass
    return cap


def _pick_row_tile(rows_p, cap_rows):
    """Largest multiple-of-128 tile that divides rows_p, is <= cap_rows, and
    leaves >= 2 grid steps when possible (so v7x's dual TCs both get work)."""
    k = rows_p // 128
    cap = max(1, cap_rows // 128)
    upper = min(cap, k if k < 2 else max(1, k // 2))
    for d in range(upper, 0, -1):
        if k % d == 0:
            return d * 128
    return 128


def slr_forward(x_flat, w1, b1, w2, b2, *, row_tile_cap=None):
    """x_flat: (rows, F) f32.  w1/w2 padded bf16, b1/b2 padded f32.

    Returns bf16 log-probs (rows_padded, V_PAD); caller slices valid rows/classes.
    """
    rows, F = x_flat.shape
    Dp = w1.shape[1]
    Vp = w2.shape[1]

    # Pad rows only up to the next multiple of 128 (waste bounded at 127 rows),
    # then pick a tile that divides the padded count exactly.
    rows_p = _round_up(rows, 128)
    if rows_p != rows:
        x_flat = jnp.pad(x_flat, ((0, rows_p - rows), (0, 0)))

    if row_tile_cap is None:
        row_tile_cap = _row_tile_cap()
    # VMEM safety net: double-buffered f32 x tile + double-buffered bf16 out
    # tile must fit comfortably under the 32 MiB scoped limit.
    vmem_budget = 24 * 1024 * 1024
    per_row_bytes = 2 * F * 4 + 2 * Vp * 2
    vmem_cap = max(128, (vmem_budget // per_row_bytes) // 128 * 128)
    row_tile = _pick_row_tile(rows_p, min(row_tile_cap, vmem_cap))

    grid = (rows_p // row_tile,)

    cost = pl.CostEstimate(
        flops=2 * rows_p * (F * Dp + Dp * Vp),
        transcendentals=rows_p * Vp,
        bytes_accessed=(rows_p * F * 4 + rows_p * Vp * 2
                        + F * Dp * 2 + Dp * Vp * 2 + (Dp + Vp) * 4),
    )

    return pl.pallas_call(
        _slr_forward_kernel,
        out_shape=jax.ShapeDtypeStruct((rows_p, Vp), jnp.bfloat16),
        grid_spec=pltpu.PrefetchScalarGridSpec(
            num_scalar_prefetch=0,
            grid=grid,
            in_specs=[
                pl.BlockSpec((row_tile, F), lambda i: (i, 0)),   # streamed f32 x
                pl.BlockSpec((F, Dp), lambda i: (0, 0)),         # resident w1
                pl.BlockSpec((1, Dp), lambda i: (0, 0)),         # resident b1
                pl.BlockSpec((Dp, Vp), lambda i: (0, 0)),        # resident w2
                pl.BlockSpec((1, Vp), lambda i: (0, 0)),         # resident b2
            ],
            out_specs=pl.BlockSpec((row_tile, Vp), lambda i: (i, 0)),
        ),
        compiler_params=pltpu.CompilerParams(
            dimension_semantics=("parallel",),       # megacore-shardable rows
            vmem_limit_bytes=32 * 1024 * 1024,       # safe on v5e/v6e/v7x
        ),
        cost_estimate=cost,
    )(x_flat, w1, b1, w2, b2)


# ------------------------------- glue code ---------------------------------
def pad_params(params, F, D, V):
    """Zero-pad hidden/vocab dims to 128; padded vocab biases get NEG_BIG."""
    w1 = jnp.zeros((F, D_PAD), jnp.bfloat16).at[:, :D].set(
        params["w1"].astype(jnp.bfloat16))
    b1 = jnp.zeros((1, D_PAD), jnp.float32).at[:, :D].set(
        params["b1"].astype(jnp.float32))
    w2 = jnp.zeros((D_PAD, V_PAD), jnp.bfloat16).at[:D, :V].set(
        params["w2"].astype(jnp.bfloat16))
    b2 = jnp.full((1, V_PAD), NEG_BIG, jnp.float32).at[:, :V].set(
        params["b2"].astype(jnp.float32))
    return w1, b1, w2, b2


def greedy_ctc_decode(labels_tn, t_length, blank_id=0):
    """labels_tn: (T, N) int. Collapse repeats, drop blanks, clip by length."""
    labels_np = np.asarray(labels_tn)
    lengths = np.asarray(t_length)
    T, N = labels_np.shape
    out = []
    for n in range(N):
        seq = labels_np[: int(lengths[n]), n]
        decoded = []
        prev = -1
        for s in seq:
            s = int(s)
            if s != prev and s != blank_id:
                decoded.append(s)
            prev = s
        out.append(decoded)
    return out


def slr_model_forward(video, t_length, params, vocab):
    """Mirrors SLRModel.forward: backbone -> log_softmax -> greedy CTC decode.

    video: (T, N, C, H, W) float32
    t_length: (N,) int32 valid-length per sequence
    Returns (backbone_out=(log_probs (T,N,V), t_length), label=list of tokens).
    """
    T, N, C, H, W = video.shape
    F_dim = C * H * W
    D = params["w1"].shape[1]
    V = params["w2"].shape[1]
    rows = T * N

    # f32 frames go straight into the kernel (bf16 cast happens in VMEM).
    x_flat = video.reshape(rows, F_dim)
    w1, b1, w2, b2 = pad_params(params, F_dim, D, V)

    logp_padded = slr_forward(x_flat, w1, b1, w2, b2)   # (rows_p, V_PAD) bf16

    # greedy labels straight off the padded bf16 output: padded classes sit at
    # ~-1e30 and never win, so no f32 rematerialization / pre-slice is needed.
    labels = jnp.argmax(logp_padded, axis=-1)[:rows].reshape(T, N).astype(jnp.int32)

    # f32 log-probs only for the sliced (T, N, V) view consumed downstream.
    log_probs = logp_padded[:rows, :V].astype(jnp.float32).reshape(T, N, V)

    # TODO(synk): the real BaseStream backbone downsamples t_length (temporal
    # conv striding); this synthetic backbone keeps the temporal length intact.
    video_length = t_length

    label_ids = greedy_ctc_decode(labels, video_length, blank_id=0)
    label_strs = [[vocab[i] for i in seq] for seq in label_ids]
    return (log_probs, video_length), label_strs


# --------------------------------- main -------------------------------------
if __name__ == "__main__":
    T, N, C, H, W = 8, 2, 3, 16, 16     # small shapes
    F_dim = C * H * W                   # 768
    D_hidden = 32
    V_vocab = 16                        # vocab size, blank id = 0

    key = jax.random.PRNGKey(0)
    k_x, k_w1, k_b1, k_w2, k_b2 = jax.random.split(key, 5)

    video = jax.random.normal(k_x, (T, N, C, H, W), dtype=jnp.float32)
    t_length = jnp.array([T, T - 2], dtype=jnp.int32)

    params = {
        "w1": jax.random.normal(k_w1, (F_dim, D_hidden), jnp.float32) * 0.05,
        "b1": jax.random.normal(k_b1, (1, D_hidden), jnp.float32) * 0.01,
        "w2": jax.random.normal(k_w2, (D_hidden, V_vocab), jnp.float32) * 0.1,
        "b2": jax.random.normal(k_b2, (1, V_vocab), jnp.float32) * 0.01,
    }

    vocab = ["<blank>"] + [f"sign_{i}" for i in range(1, V_vocab)]

    (log_probs, video_length), label = slr_model_forward(
        video, t_length, params, vocab)
    jax.block_until_ready(log_probs)

    # sanity 1: log_softmax rows sum to ~1 in prob space (bf16 output rounding
    # means the stored rows are only ~1%-normalized; padding stays inert).
    probs_sum = jnp.exp(log_probs).sum(axis=-1)
    assert bool(jnp.allclose(probs_sum, 1.0, atol=5e-2)), "log_softmax check failed"
    assert log_probs.shape == (T, N, V_vocab)
    assert len(label) == N

    # sanity 2: bf16-pipeline kernel matches the pure-f32 reference within tol
    x_ref = video.reshape(T * N, F_dim)
    h_ref = jnp.maximum(x_ref @ params["w1"] + params["b1"], 0.0)
    logits_ref = h_ref @ params["w2"] + params["b2"]
    logp_ref = jax.nn.log_softmax(logits_ref, axis=-1).reshape(T, N, V_vocab)
    max_err = float(jnp.max(jnp.abs(log_probs - logp_ref)))
    assert max_err < 1e-1, f"kernel vs f32 reference mismatch: {max_err}"

    print("KERNEL_OK")
</pallas_src>

<mosaic_0001>
module attributes {stable_mosaic.version = 11 : i64} {
  func.func @_slr_forward_kernel(%arg0: i32, %arg1: memref<128x768xf32, #tpu.memory_space<vmem>>, %arg2: memref<768x128xbf16, #tpu.memory_space<vmem>>, %arg3: memref<1x128xf32, #tpu.memory_space<vmem>>, %arg4: memref<128x128xbf16, #tpu.memory_space<vmem>>, %arg5: memref<1x128xf32, #tpu.memory_space<vmem>>, %arg6: memref<128x128xbf16, #tpu.memory_space<vmem>>) attributes {dimension_semantics = [#tpu.dimension_semantics<parallel>], iteration_bounds = array<i64: 1>, scalar_prefetch = 0 : i64, scratch_operands = 0 : i64, tpu.core_type = #tpu.core_type<tc>, window_params = [{transform_indices = @transform_0, window_bounds = array<i64: 128, 768>}, {pipeline_mode = #tpu.pipeline_mode<synchronous>, transform_indices = @transform_1, window_bounds = array<i64: 768, 128>}, {pipeline_mode = #tpu.pipeline_mode<synchronous>, transform_indices = @transform_2, window_bounds = array<i64: 1, 128>}, {pipeline_mode = #tpu.pipeline_mode<synchronous>, transform_indices = @transform_3, window_bounds = array<i64: 128, 128>}, {pipeline_mode = #tpu.pipeline_mode<synchronous>, transform_indices = @transform_4, window_bounds = array<i64: 1, 128>}, {transform_indices = @transform_5, window_bounds = array<i64: 128, 128>}]} {
    %c0 = arith.constant 0 : index
    %c0_0 = arith.constant 0 : index
    %0 = vector.load %arg1[%c0, %c0_0] : memref<128x768xf32, #tpu.memory_space<vmem>>, vector<128x768xf32>
    %1 = arith.truncf %0 : vector<128x768xf32> to vector<128x768xbf16>
    %c0_1 = arith.constant 0 : index
    %c0_2 = arith.constant 0 : index
    %2 = vector.load %arg2[%c0_1, %c0_2] : memref<768x128xbf16, #tpu.memory_space<vmem>>, vector<768x128xbf16>
    %cst = arith.constant dense<0.000000e+00> : vector<128x128xf32>
    %3 = tpu.matmul %1, %2, %cst {dimension_numbers = #tpu.dot_dimension_numbers<[1], [0], [0], [1], [0, 0, 1, 1], [], []>} : vector<128x768xbf16>, vector<768x128xbf16>, vector<128x128xf32> -> vector<128x128xf32>
    %c0_3 = arith.constant 0 : index
    %c0_4 = arith.constant 0 : index
    %4 = vector.load %arg3[%c0_3, %c0_4] : memref<1x128xf32, #tpu.memory_space<vmem>>, vector<1x128xf32>
    %5 = vector.broadcast %4 : vector<1x128xf32> to vector<128x128xf32>
    %6 = arith.addf %3, %5 : vector<128x128xf32>
    %cst_5 = arith.constant 0.000000e+00 : f32
    %7 = vector.broadcast %cst_5 : f32 to vector<128x128xf32>
    %8 = arith.maximumf %6, %7 : vector<128x128xf32>
    %9 = arith.truncf %8 : vector<128x128xf32> to vector<128x128xbf16>
    %c0_6 = arith.constant 0 : index
    %c0_7 = arith.constant 0 : index
    %10 = vector.load %arg4[%c0_6, %c0_7] : memref<128x128xbf16, #tpu.memory_space<vmem>>, vector<128x128xbf16>
    %cst_8 = arith.constant dense<0.000000e+00> : vector<128x128xf32>
    %11 = tpu.matmul %9, %10, %cst_8 {dimension_numbers = #tpu.dot_dimension_numbers<[1], [0], [0], [1], [0, 0, 1, 1], [], []>} : vector<128x128xbf16>, vector<128x128xbf16>, vector<128x128xf32> -> vector<128x128xf32>
    %c0_9 = arith.constant 0 : index
    %c0_10 = arith.constant 0 : index
    %12 = vector.load %arg5[%c0_9, %c0_10] : memref<1x128xf32, #tpu.memory_space<vmem>>, vector<1x128xf32>
    %13 = vector.broadcast %12 : vector<1x128xf32> to vector<128x128xf32>
    %14 = arith.addf %11, %13 : vector<128x128xf32>
    %cst_11 = arith.constant dense<0xFF800000> : vector<128xf32>
    %15 = vector.multi_reduction <maximumf>, %14, %cst_11 [1] : vector<128x128xf32> to vector<128xf32>
    %16 = vector.shape_cast %15 : vector<128xf32> to vector<128x1xf32>
    %17 = vector.broadcast %16 : vector<128x1xf32> to vector<128x128xf32>
    %18 = arith.subf %14, %17 : vector<128x128xf32>
    %19 = math.exp %18 : vector<128x128xf32>
    %cst_12 = arith.constant dense<0.000000e+00> : vector<128xf32>
    %20 = vector.multi_reduction <add>, %19, %cst_12 [1] : vector<128x128xf32> to vector<128xf32>
    %21 = vector.shape_cast %20 : vector<128xf32> to vector<128x1xf32>
    %22 = math.log %21 : vector<128x1xf32>
    %23 = vector.broadcast %22 : vector<128x1xf32> to vector<128x128xf32>
    %24 = arith.subf %18, %23 : vector<128x128xf32>
    %25 = arith.truncf %24 : vector<128x128xf32> to vector<128x128xbf16>
    %c0_13 = arith.constant 0 : index
    %c0_14 = arith.constant 0 : index
    %26 = vector.load %arg6[%c0_13, %c0_14] : memref<128x128xbf16, #tpu.memory_space<vmem>>, vector<128x128xbf16>
    tpu.vector_store %arg6[%c0_13, %c0_14], %25 {strides = array<i32>} : memref<128x128xbf16, #tpu.memory_space<vmem>>, vector<128x128xbf16>,
    return
  }
  func.func @transform_0(%arg0: i32) -> (i32, i32) {
    %c0_i32 = arith.constant 0 : i32
    %c0_i32_0 = arith.constant 0 : i32
    return %arg0, %c0_i32 : i32, i32
  }
  func.func @transform_1(%arg0: i32) -> (i32, i32) {
    %c0_i32 = arith.constant 0 : i32
    %c0_i32_0 = arith.constant 0 : i32
    %c0_i32_1 = arith.constant 0 : i32
    return %c0_i32, %c0_i32_0 : i32, i32
  }
  func.func @transform_2(%arg0: i32) -> (i32, i32) {
    %c0_i32 = arith.constant 0 : i32
    %c0_i32_0 = arith.constant 0 : i32
    %c0_i32_1 = arith.constant 0 : i32
    return %c0_i32, %c0_i32_0 : i32, i32
  }
  func.func @transform_3(%arg0: i32) -> (i32, i32) {
    %c0_i32 = arith.constant 0 : i32
    %c0_i32_0 = arith.constant 0 : i32
    %c0_i32_1 = arith.constant 0 : i32
    return %c0_i32, %c0_i32_0 : i32, i32
  }
  func.func @transform_4(%arg0: i32) -> (i32, i32) {
    %c0_i32 = arith.constant 0 : i32
    %c0_i32_0 = arith.constant 0 : i32
    %c0_i32_1 = arith.constant 0 : i32
    return %c0_i32, %c0_i32_0 : i32, i32
  }
  func.func @transform_5(%arg0: i32) -> (i32, i32) {
    %c0_i32 = arith.constant 0 : i32
    %c0_i32_0 = arith.constant 0 : i32
    return %arg0, %c0_i32 : i32, i32
  }
}

</mosaic_0001>

<llo_original>
// kernel: tpu_custom_call.1
$region0: #{tpu_custom_call.1}
  #allocation0 [shape = 'u32[]', space=smem, size = 0x4, offset = 0x4, fixed_abs, tag = 'smem constant byte address 0x4 - core index']
  #allocation1 [shape = 'u32[144,128]{1,0:T(1,128)}', space=vmem, size = 0x12000, scoped, tag = 'internal scratch']
  %s0 = inlined_call_operand.hbm [shape: f32[128,768], index: 0, kind: input, shape index: {}]
  %s1 = inlined_call_operand.hbm [shape: bf16[768,128], index: 1, kind: input, shape index: {}]
  %s2 = inlined_call_operand.vmem [shape: f32[1,128], index: 2, kind: input, shape index: {}]
  %s3 = inlined_call_operand.hbm [shape: bf16[128,128], index: 3, kind: input, shape index: {}]
  %s4 = inlined_call_operand.vmem [shape: f32[1,128], index: 4, kind: input, shape index: {}]
  %s5 = inlined_call_operand.hbm [shape: bf16[128,128], index: 5, kind: output, shape index: {}]
  %s6 = sld [smem:[#allocation0]]
  $region42: #{tpu_custom_call.1} parent=0
    _
  %s8 = ssub.s32 1, %s6
  %s9 = scalar_select 0, %s8, %s6
  $region1: #{tpu_custom_call.1} parent=0
    #allocation2 [shape = 'u8[393216]{0}', space=vmem, size = 0x60000, scoped, tag = 'input window, operand 0, single buffered']
    #allocation3 [shape = 's32[1]{0}', space=sflag, size = 0x4, scoped, tag = 'scoped memory for tpu_custom_call.1']
    #allocation4 [shape = 's32[1]{0}', space=sflag, size = 0x4, scoped, tag = 'scoped memory for tpu_custom_call.1']
    #allocation5 [shape = 'u8[196608]{0}', space=vmem, size = 0x30000, scoped, tag = 'input window, operand 1, single buffered']
    #allocation6 [shape = 's32[1]{0}', space=sflag, size = 0x4, scoped, tag = 'scoped memory for tpu_custom_call.1']
    #allocation7 [shape = 'u8[32768]{0}', space=vmem, size = 0x8000, scoped, tag = 'input window, operand 3, single buffered']
    #allocation8 [shape = 'u8[32768]{0}', space=vmem, size = 0x8000, scoped, tag = 'output window, operand 0, single buffered']
    %10 = vsyncpa [#allocation3], 0
    %11 = vsyncpa [#allocation6], 0
    %12 = vsyncpa [#allocation4], 0
    // Predicated region
    $region2: #{tpu_custom_call.1} parent=1 // pred_check
      _
    $region3: #{tpu_custom_call.1} parent=1 // pred_check_branch
      %14 = sbr.rel (0) target = $region5
    $region4: #{tpu_custom_call.1} parent=1 // pred_region
      %s16 = ssub.s32 12288, 12288
      %17 = vsyncadd [#allocation3], %s16
      %s18 = sshll.u32 [#allocation2], 4
      %s19 = int_to_ptr.vmem [resolvable:$true] %s18
      %24 = dma.hbm_to_vmem [thread:$0]  %s0, 12288, %s19, [#allocation3], 768, 768, 48
    $region5: #{tpu_custom_call.1} parent=1 // pred_fallthru
      _
    // Predicated region
    $region6: #{tpu_custom_call.1} parent=1 // pred_check
      _
    $region7: #{tpu_custom_call.1} parent=1 // pred_check_branch
      %26 = sbr.rel (0) target = $region9
    $region8: #{tpu_custom_call.1} parent=1 // pred_region
      %s28 = ssub.s32 6144, 6144
      %29 = vsyncadd [#allocation6], %s28
      %s30 = sshll.u32 [#allocation5], 4
      %s31 = int_to_ptr.vmem [resolvable:$true] %s30
      %36 = dma.hbm_to_vmem [thread:$0]  %s1, 6144, %s31, [#allocation6], 64, 64, 4
    $region9: #{tpu_custom_call.1} parent=1 // pred_fallthru
      _
    // Predicated region
    $region10: #{tpu_custom_call.1} parent=1 // pred_check
      _
    $region11: #{tpu_custom_call.1} parent=1 // pred_check_branch
      %38 = sbr.rel (0) target = $region13
    $region12: #{tpu_custom_call.1} parent=1 // pred_region
      _
    $region13: #{tpu_custom_call.1} parent=1 // pred_fallthru
      _
    // Predicated region
    $region14: #{tpu_custom_call.1} parent=1 // pred_check
      _
    $region15: #{tpu_custom_call.1} parent=1 // pred_check_branch
      %40 = sbr.rel (0) target = $region17
    $region16: #{tpu_custom_call.1} parent=1 // pred_region
      %s42 = ssub.s32 1024, 1024
      %43 = vsyncadd [#allocation6], %s42
      %s44 = sshll.u32 [#allocation7], 4
      %s45 = int_to_ptr.vmem [resolvable:$true] %s44
      %50 = dma.hbm_to_vmem [thread:$0]  %s3, 1024, %s45, [#allocation6], 64, 64, 4
    $region17: #{tpu_custom_call.1} parent=1 // pred_fallthru
      _
    // Predicated region
    $region18: #{tpu_custom_call.1} parent=1 // pred_check
      _
    $region19: #{tpu_custom_call.1} parent=1 // pred_check_branch
      %52 = sbr.rel (0) target = $region21
    $region20: #{tpu_custom_call.1} parent=1 // pred_region
      _
    $region21: #{tpu_custom_call.1} parent=1 // pred_fallthru
      _
    // Predicated region
    $region22: #{tpu_custom_call.1} parent=1 // pred_check
      _
    $region23: #{tpu_custom_call.1} parent=1 // pred_check_branch
      %54 = sbr.rel (0) target = $region25
    $region24: #{tpu_custom_call.1} parent=1 // pred_region
      %55 = dma.done [#allocation3], 12288
    $region25: #{tpu_custom_call.1} parent=1 // pred_fallthru
      _
    // Predicated region
    $region26: #{tpu_custom_call.1} parent=1 // pred_check
      _
    $region27: #{tpu_custom_call.1} parent=1 // pred_check_branch
      %57 = sbr.rel (0) target = $region29
    $region28: #{tpu_custom_call.1} parent=1 // pred_region
      %58 = dma.done [#allocation6], 6144
    $region29: #{tpu_custom_call.1} parent=1 // pred_fallthru
      _
    // Predicated region
    $region30: #{tpu_custom_call.1} parent=1 // pred_check
      _
    $region31: #{tpu_custom_call.1} parent=1 // pred_check_branch
      %60 = sbr.rel (0) target = $region33
    $region32: #{tpu_custom_call.1} parent=1 // pred_region
      %61 = dma.done [#allocation6], 1024
    $region33: #{tpu_custom_call.1} parent=1 // pred_fallthru
      _
    %v63 = vld [vmem:[#allocation2] sm:$0xff]
    %v64 = vld [vmem:[#allocation2 + $0x8] sm:$0xff]
    %v65 = vld [vmem:[#allocation2 + $0x10] sm:$0xff]
    %v66 = vld [vmem:[#allocation2 + $0x18] sm:$0xff]
    %v67 = vld [vmem:[#allocation2 + $0x20] sm:$0xff]
    %v68 = vld [vmem:[#allocation2 + $0x28] sm:$0xff]
    %v69 = vld [vmem:[#allocation2 + $0x30] sm:$0xff]
    %v70 = vld [vmem:[#allocation2 + $0x38] sm:$0xff]
    %v71 = vld [vmem:[#allocation2 + $0x40] sm:$0xff]
    %v72 = vld [vmem:[#allocation2 + $0x48] sm:$0xff]
    %v73 = vld [vmem:[#allocation2 + $0x50] sm:$0xff]
    %v74 = vld [vmem:[#allocation2 + $0x58] sm:$0xff]
    %v75 = vld [vmem:[#allocation2 + $0x60] sm:$0xff]
    %v76 = vld [vmem:[#allocation2 + $0x68] sm:$0xff]
    %v77 = vld [vmem:[#allocation2 + $0x70] sm:$0xff]
    %v78 = vld [vmem:[#allocation2 + $0x78] sm:$0xff]
    %v79 = vld [vmem:[#allocation2 + $0x80] sm:$0xff]
    %v80 = vld [vmem:[#allocation2 + $0x88] sm:$0xff]
    %v81 = vld [vmem:[#allocation2 + $0x90] sm:$0xff]
    %v82 = vld [vmem:[#allocation2 + $0x98] sm:$0xff]
    %v83 = vld [vmem:[#allocation2 + $0xa0] sm:$0xff]
    %v84 = vld [vmem:[#allocation2 + $0xa8] sm:$0xff]
    %v85 = vld [vmem:[#allocation2 + $0xb0] sm:$0xff]
    %v86 = vld [vmem:[#allocation2 + $0xb8] sm:$0xff]
    %v87 = vld [vmem:[#allocation2 + $0xc0] sm:$0xff]
    %v88 = vld [vmem:[#allocation2 + $0xc8] sm:$0xff]
    %v89 = vld [vmem:[#allocation2 + $0xd0] sm:$0xff]
    %v90 = vld [vmem:[#allocation2 + $0xd8] sm:$0xff]
    %v91 = vld [vmem:[#allocation2 + $0xe0] sm:$0xff]
    %v92 = vld [vmem:[#allocation2 + $0xe8] sm:$0xff]
    %v93 = vld [vmem:[#allocation2 + $0xf0] sm:$0xff]
    %v94 = vld [vmem:[#allocation2 + $0xf8] sm:$0xff]
    %v95 = vld [vmem:[#allocation2 + $0x100] sm:$0xff]
    %v96 = vld [vmem:[#allocation2 + $0x108] sm:$0xff]
    %v97 = vld [vmem:[#allocation2 + $0x110] sm:$0xff]
    %v98 = vld [vmem:[#allocation2 + $0x118] sm:$0xff]
    %v99 = vld [vmem:[#allocation2 + $0x120] sm:$0xff]
    %v100 = vld [vmem:[#allocation2 + $0x128] sm:$0xff]
    %v101 = vld [vmem:[#allocation2 + $0x130] sm:$0xff]
    %v102 = vld [vmem:[#allocation2 + $0x138] sm:$0xff]
    %v103 = vld [vmem:[#allocation2 + $0x140] sm:$0xff]
    %v104 = vld [vmem:[#allocation2 + $0x148] sm:$0xff]
    %v105 = vld [vmem:[#allocation2 + $0x150] sm:$0xff]
    %v106 = vld [vmem:[#allocation2 + $0x158] sm:$0xff]
    %v107 = vld [vmem:[#allocation2 + $0x160] sm:$0xff]
    %v108 = vld [vmem:[#allocation2 + $0x168] sm:$0xff]
    %v109 = vld [vmem:[#allocation2 + $0x170] sm:$0xff]
    %v110 = vld [vmem:[#allocation2 + $0x178] sm:$0xff]
    %v111 = vld [vmem:[#allocation2 + $0x180] sm:$0xff]
    %v112 = vld [vmem:[#allocation2 + $0x188] sm:$0xff]
    %v113 = vld [vmem:[#allocation2 + $0x190] sm:$0xff]
    %v114 = vld [vmem:[#allocation2 + $0x198] sm:$0xff]
    %v115 = vld [vmem:[#allocation2 + $0x1a0] sm:$0xff]
    %v116 = vld [vmem:[#allocation2 + $0x1a8] sm:$0xff]
    %v117 = vld [vmem:[#allocation2 + $0x1b0] sm:$0xff]
    %v118 = vld [vmem:[#allocation2 + $0x1b8] sm:$0xff]
    %v119 = vld [vmem:[#allocation2 + $0x1c0] sm:$0xff]
    %v120 = vld [vmem:[#allocation2 + $0x1c8] sm:$0xff]
    %v121 = vld [vmem:[#allocation2 + $0x1d0] sm:$0xff]
    %v122 = vld [vmem:[#allocation2 + $0x1d8] sm:$0xff]
    %v123 = vld [vmem:[#allocation2 + $0x1e0] sm:$0xff]
    %v124 = vld [vmem:[#allocation2 + $0x1e8] sm:$0xff]
    %v125 = vld [vmem:[#allocation2 + $0x1f0] sm:$0xff]
    %v126 = vld [vmem:[#allocation2 + $0x1f8] sm:$0xff]
    %v127 = vld [vmem:[#allocation2 + $0x200] sm:$0xff]
    %v128 = vld [vmem:[#allocation2 + $0x208] sm:$0xff]
    %v129 = vld [vmem:[#allocation2 + $0x210] sm:$0xff]
    %v130 = vld [vmem:[#allocation2 + $0x218] sm:$0xff]
    %v131 = vld [vmem:[#allocation2 + $0x220] sm:$0xff]
    %v132 = vld [vmem:[#allocation2 + $0x228] sm:$0xff]
    %v133 = vld [vmem:[#allocation2 + $0x230] sm:$0xff]
    %v134 = vld [vmem:[#allocation2 + $0x238] sm:$0xff]
    %v135 = vld [vmem:[#allocation2 + $0x240] sm:$0xff]
    %v136 = vld [vmem:[#allocation2 + $0x248] sm:$0xff]
    %v137 = vld [vmem:[#allocation2 + $0x250] sm:$0xff]
    %v138 = vld [vmem:[#allocation2 + $0x258] sm:$0xff]
    %v139 = vld [vmem:[#allocation2 + $0x260] sm:$0xff]
    %v140 = vld [vmem:[#allocation2 + $0x268] sm:$0xff]
    %v141 = vld [vmem:[#allocation2 + $0x270] sm:$0xff]
    %v142 = vld [vmem:[#allocation2 + $0x278] sm:$0xff]
    %v143 = vld [vmem:[#allocation2 + $0x280] sm:$0xff]
    %v144 = vld [vmem:[#allocation2 + $0x288] sm:$0xff]
    %v145 = vld [vmem:[#allocation2 + $0x290] sm:$0xff]
    %v146 = vld [vmem:[#allocation2 + $0x298] sm:$0xff]
    %v147 = vld [vmem:[#allocation2 + $0x2a0] sm:$0xff]
    %v148 = vld [vmem:[#allocation2 + $0x2a8] sm:$0xff]
    %v149 = vld [vmem:[#allocation2 + $0x2b0] sm:$0xff]
    %v150 = vld [vmem:[#allocation2 + $0x2b8] sm:$0xff]
    %v151 = vld [vmem:[#allocation2 + $0x2c0] sm:$0xff]
    %v152 = vld [vmem:[#allocation2 + $0x2c8] sm:$0xff]
    %v153 = vld [vmem:[#allocation2 + $0x2d0] sm:$0xff]
    %v154 = vld [vmem:[#allocation2 + $0x2d8] sm:$0xff]
    %v155 = vld [vmem:[#allocation2 + $0x2e0] sm:$0xff]
    %v156 = vld [vmem:[#allocation2 + $0x2e8] sm:$0xff]
    %v157 = vld [vmem:[#allocation2 + $0x2f0] sm:$0xff]
    %v158 = vld [vmem:[#allocation2 + $0x2f8] sm:$0xff]
    %v159 = vpack.c.bf16 %v69, %v63
    %v160 = vpack.c.bf16 %v70, %v64
    %v161 = vpack.c.bf16 %v71, %v65
    %v162 = vpack.c.bf16 %v72, %v66
    %v163 = vpack.c.bf16 %v73, %v67
    %v164 = vpack.c.bf16 %v74, %v68
    %v165 = vpack.c.bf16 %v81, %v75
    %v166 = vpack.c.bf16 %v82, %v76
    %v167 = vpack.c.bf16 %v83, %v77
    %v168 = vpack.c.bf16 %v84, %v78
    %v169 = vpack.c.bf16 %v85, %v79
    %v170 = vpack.c.bf16 %v86, %v80
    %v171 = vpack.c.bf16 %v93, %v87
    %v172 = vpack.c.bf16 %v94, %v88
    %v173 = vpack.c.bf16 %v95, %v89
    %v174 = vpack.c.bf16 %v96, %v90
    %v175 = vpack.c.bf16 %v97, %v91
    %v176 = vpack.c.bf16 %v98, %v92
    %v177 = vpack.c.bf16 %v105, %v99
    %v178 = vpack.c.bf16 %v106, %v100
    %v179 = vpack.c.bf16 %v107, %v101
    %v180 = vpack.c.bf16 %v108, %v102
    %v181 = vpack.c.bf16 %v109, %v103
    %v182 = vpack.c.bf16 %v110, %v104
    %v183 = vpack.c.bf16 %v117, %v111
    %v184 = vpack.c.bf16 %v118, %v112
    %v185 = vpack.c.bf16 %v119, %v113
    %v186 = vpack.c.bf16 %v120, %v114
    %v187 = vpack.c.bf16 %v121, %v115
    %v188 = vpack.c.bf16 %v122, %v116
    %v189 = vpack.c.bf16 %v129, %v123
    %v190 = vpack.c.bf16 %v130, %v124
    %v191 = vpack.c.bf16 %v131, %v125
    %v192 = vpack.c.bf16 %v132, %v126
    %v193 = vpack.c.bf16 %v133, %v127
    %v194 = vpack.c.bf16 %v134, %v128
    %v195 = vpack.c.bf16 %v141, %v135
    %v196 = vpack.c.bf16 %v142, %v136
    %v197 = vpack.c.bf16 %v143, %v137
    %v198 = vpack.c.bf16 %v144, %v138
    %v199 = vpack.c.bf16 %v145, %v139
    %v200 = vpack.c.bf16 %v146, %v140
    %v201 = vpack.c.bf16 %v153, %v147
    %v202 = vpack.c.bf16 %v154, %v148
    %v203 = vpack.c.bf16 %v155, %v149
    %v204 = vpack.c.bf16 %v156, %v150
    %v205 = vpack.c.bf16 %v157, %v151
    %v206 = vpack.c.bf16 %v158, %v152
    %v207 = vld [vmem:[#allocation5] sm:$0xf]
    %v208 = vld [vmem:[#allocation5 + $0x4] sm:$0xf]
    %v209 = vld [vmem:[#allocation5 + $0x8] sm:$0xf]
    %v210 = vld [vmem:[#allocation5 + $0xc] sm:$0xf]
    %v211 = vld [vmem:[#allocation5 + $0x10] sm:$0xf]
    %v212 = vld [vmem:[#allocation5 + $0x14] sm:$0xf]
    %v213 = vld [vmem:[#allocation5 + $0x18] sm:$0xf]
    %v214 = vld [vmem:[#allocation5 + $0x1c] sm:$0xf]
    %v215 = vld [vmem:[#allocation5 + $0x20] sm:$0xf]
    %v216 = vld [vmem:[#allocation5 + $0x24] sm:$0xf]
    %v217 = vld [vmem:[#allocation5 + $0x28] sm:$0xf]
    %v218 = vld [vmem:[#allocation5 + $0x2c] sm:$0xf]
    %v219 = vld [vmem:[#allocation5 + $0x30] sm:$0xf]
    %v220 = vld [vmem:[#allocation5 + $0x34] sm:$0xf]
    %v221 = vld [vmem:[#allocation5 + $0x38] sm:$0xf]
    %v222 = vld [vmem:[#allocation5 + $0x3c] sm:$0xf]
    %v223 = vld [vmem:[#allocation5 + $0x40] sm:$0xf]
    %v224 = vld [vmem:[#allocation5 + $0x44] sm:$0xf]
    %v225 = vld [vmem:[#allocation5 + $0x48] sm:$0xf]
    %v226 = vld [vmem:[#allocation5 + $0x4c] sm:$0xf]
    %v227 = vld [vmem:[#allocation5 + $0x50] sm:$0xf]
    %v228 = vld [vmem:[#allocation5 + $0x54] sm:$0xf]
    %v229 = vld [vmem:[#allocation5 + $0x58] sm:$0xf]
    %v230 = vld [vmem:[#allocation5 + $0x5c] sm:$0xf]
    %v231 = vld [vmem:[#allocation5 + $0x60] sm:$0xf]
    %v232 = vld [vmem:[#allocation5 + $0x64] sm:$0xf]
    %v233 = vld [vmem:[#allocation5 + $0x68] sm:$0xf]
    %v234 = vld [vmem:[#allocation5 + $0x6c] sm:$0xf]
    %v235 = vld [vmem:[#allocation5 + $0x70] sm:$0xf]
    %v236 = vld [vmem:[#allocation5 + $0x74] sm:$0xf]
    %v237 = vld [vmem:[#allocation5 + $0x78] sm:$0xf]
    %v238 = vld [vmem:[#allocation5 + $0x7c] sm:$0xf]
    %v239 = vld [vmem:[#allocation5 + $0x80] sm:$0xf]
    %v240 = vld [vmem:[#allocation5 + $0x84] sm:$0xf]
    %v241 = vld [vmem:[#allocation5 + $0x88] sm:$0xf]
    %v242 = vld [vmem:[#allocation5 + $0x8c] sm:$0xf]
    %v243 = vld [vmem:[#allocation5 + $0x90] sm:$0xf]
    %v244 = vld [vmem:[#allocation5 + $0x94] sm:$0xf]
    %v245 = vld [vmem:[#allocation5 + $0x98] sm:$0xf]
    %v246 = vld [vmem:[#allocation5 + $0x9c] sm:$0xf]
    %v247 = vld [vmem:[#allocation5 + $0xa0] sm:$0xf]
    %v248 = vld [vmem:[#allocation5 + $0xa4] sm:$0xf]
    %v249 = vld [vmem:[#allocation5 + $0xa8] sm:$0xf]
    %v250 = vld [vmem:[#allocation5 + $0xac] sm:$0xf]
    %v251 = vld [vmem:[#allocation5 + $0xb0] sm:$0xf]
    %v252 = vld [vmem:[#allocation5 + $0xb4] sm:$0xf]
    %v253 = vld [vmem:[#allocation5 + $0xb8] sm:$0xf]
    %v254 = vld [vmem:[#allocation5 + $0xbc] sm:$0xf]
    %v255 = vld [vmem:[#allocation5 + $0xc0] sm:$0xf]
    %v256 = vld [vmem:[#allocation5 + $0xc4] sm:$0xf]
    %v257 = vld [vmem:[#allocation5 + $0xc8] sm:$0xf]
    %v258 = vld [vmem:[#allocation5 + $0xcc] sm:$0xf]
    %v259 = vld [vmem:[#allocation5 + $0xd0] sm:$0xf]
    %v260 = vld [vmem:[#allocation5 + $0xd4] sm:$0xf]
    %v261 = vld [vmem:[#allocation5 + $0xd8] sm:$0xf]
    %v262 = vld [vmem:[#allocation5 + $0xdc] sm:$0xf]
    %v263 = vld [vmem:[#allocation5 + $0xe0] sm:$0xf]
    %v264 = vld [vmem:[#allocation5 + $0xe4] sm:$0xf]
    %v265 = vld [vmem:[#allocation5 + $0xe8] sm:$0xf]
    %v266 = vld [vmem:[#allocation5 + $0xec] sm:$0xf]
    %v267 = vld [vmem:[#allocation5 + $0xf0] sm:$0xf]
    %v268 = vld [vmem:[#allocation5 + $0xf4] sm:$0xf]
    %v269 = vld [vmem:[#allocation5 + $0xf8] sm:$0xf]
    %v270 = vld [vmem:[#allocation5 + $0xfc] sm:$0xf]
    %v271 = vld [vmem:[#allocation5 + $0x100] sm:$0xf]
    %v272 = vld [vmem:[#allocation5 + $0x104] sm:$0xf]
    %v273 = vld [vmem:[#allocation5 + $0x108] sm:$0xf]
    %v274 = vld [vmem:[#allocation5 + $0x10c] sm:$0xf]
    %v275 = vld [vmem:[#allocation5 + $0x110] sm:$0xf]
    %v276 = vld [vmem:[#allocation5 + $0x114] sm:$0xf]
    %v277 = vld [vmem:[#allocation5 + $0x118] sm:$0xf]
    %v278 = vld [vmem:[#allocation5 + $0x11c] sm:$0xf]
    %v279 = vld [vmem:[#allocation5 + $0x120] sm:$0xf]
    %v280 = vld [vmem:[#allocation5 + $0x124] sm:$0xf]
    %v281 = vld [vmem:[#allocation5 + $0x128] sm:$0xf]
    %v282 = vld [vmem:[#allocation5 + $0x12c] sm:$0xf]
    %v283 = vld [vmem:[#allocation5 + $0x130] sm:$0xf]
    %v284 = vld [vmem:[#allocation5 + $0x134] sm:$0xf]
    %v285 = vld [vmem:[#allocation5 + $0x138] sm:$0xf]
    %v286 = vld [vmem:[#allocation5 + $0x13c] sm:$0xf]
    %v287 = vld [vmem:[#allocation5 + $0x140] sm:$0xf]
    %v288 = vld [vmem:[#allocation5 + $0x144] sm:$0xf]
    %v289 = vld [vmem:[#allocation5 + $0x148] sm:$0xf]
    %v290 = vld [vmem:[#allocation5 + $0x14c] sm:$0xf]
    %v291 = vld [vmem:[#allocation5 + $0x150] sm:$0xf]
    %v292 = vld [vmem:[#allocation5 + $0x154] sm:$0xf]
    %v293 = vld [vmem:[#allocation5 + $0x158] sm:$0xf]
    %v294 = vld [vmem:[#allocation5 + $0x15c] sm:$0xf]
    %v295 = vld [vmem:[#allocation5 + $0x160] sm:$0xf]
    %v296 = vld [vmem:[#allocation5 + $0x164] sm:$0xf]
    %v297 = vld [vmem:[#allocation5 + $0x168] sm:$0xf]
    %v298 = vld [vmem:[#allocation5 + $0x16c] sm:$0xf]
    %v299 = vld [vmem:[#allocation5 + $0x170] sm:$0xf]
    %v300 = vld [vmem:[#allocation5 + $0x174] sm:$0xf]
    %v301 = vld [vmem:[#allocation5 + $0x178] sm:$0xf]
    %v302 = vld [vmem:[#allocation5 + $0x17c] sm:$0xf]
    %v303 = vld [vmem:[%s2] sm:$0x1]
    %v305 = vlaneseq
    %v306 = vshrl.u32 %v305, 7
    %v307 = vsub.s32 0, %v306
    %v308 = vrot.slane %v303, %v307
    %v406 = vunpack.c.l.b16 %v207
    %v407 = vunpack.c.l.b16 %v208
    %v408 = vunpack.c.l.b16 %v209
    %v409 = vunpack.c.l.b16 %v210
    %v410 = vunpack.c.l.b16 %v211
    %v411 = vunpack.c.l.b16 %v212
    %v412 = vunpack.c.l.b16 %v213
    %v413 = vunpack.c.l.b16 %v214
    %v414 = vunpack.c.l.b16 %v215
    %v415 = vunpack.c.l.b16 %v216
    %v416 = vunpack.c.l.b16 %v217
    %v417 = vunpack.c.l.b16 %v218
    %v418 = vunpack.c.l.b16 %v219
    %v419 = vunpack.c.l.b16 %v220
    %v420 = vunpack.c.l.b16 %v221
    %v421 = vunpack.c.l.b16 %v222
    %v422 = vunpack.c.l.b16 %v223
    %v423 = vunpack.c.l.b16 %v224
    %v424 = vunpack.c.l.b16 %v225
    %v425 = vunpack.c.l.b16 %v226
    %v426 = vunpack.c.l.b16 %v227
    %v427 = vunpack.c.l.b16 %v228
    %v428 = vunpack.c.l.b16 %v229
    %v429 = vunpack.c.l.b16 %v230
    %v430 = vunpack.c.l.b16 %v231
    %v431 = vunpack.c.l.b16 %v232
    %v432 = vunpack.c.l.b16 %v233
    %v433 = vunpack.c.l.b16 %v234
    %v434 = vunpack.c.l.b16 %v235
    %v435 = vunpack.c.l.b16 %v236
    %v436 = vunpack.c.l.b16 %v237
    %v437 = vunpack.c.l.b16 %v238
    %v438 = vunpack.c.l.b16 %v239
    %v439 = vunpack.c.l.b16 %v240
    %v440 = vunpack.c.l.b16 %v241
    %v441 = vunpack.c.l.b16 %v242
    %v442 = vunpack.c.l.b16 %v243
    %v443 = vunpack.c.l.b16 %v244
    %v444 = vunpack.c.l.b16 %v245
    %v445 = vunpack.c.l.b16 %v246
    %v446 = vunpack.c.l.b16 %v247
    %v447 = vunpack.c.l.b16 %v248
    %v448 = vunpack.c.l.b16 %v249
    %v449 = vunpack.c.l.b16 %v250
    %v450 = vunpack.c.l.b16 %v251
    %v451 = vunpack.c.l.b16 %v252
    %v452 = vunpack.c.l.b16 %v253
    %v453 = vunpack.c.l.b16 %v254
    %v454 = vunpack.c.l.b16 %v255
    %v455 = vunpack.c.l.b16 %v256
    %v456 = vunpack.c.l.b16 %v257
    %v457 = vunpack.c.l.b16 %v258
    %v458 = vunpack.c.l.b16 %v259
    %v459 = vunpack.c.l.b16 %v260
    %v460 = vunpack.c.l.b16 %v261
    %v461 = vunpack.c.l.b16 %v262
    %v462 = vunpack.c.l.b16 %v263
    %v463 = vunpack.c.l.b16 %v264
    %v464 = vunpack.c.l.b16 %v265
    %v465 = vunpack.c.l.b16 %v266
    %v466 = vunpack.c.l.b16 %v267
    %v467 = vunpack.c.l.b16 %v268
    %v468 = vunpack.c.l.b16 %v269
    %v469 = vunpack.c.l.b16 %v270
    %v470 = vunpack.c.l.b16 %v271
    %v471 = vunpack.c.l.b16 %v272
    %v472 = vunpack.c.l.b16 %v273
    %v473 = vunpack.c.l.b16 %v274
    %v474 = vunpack.c.l.b16 %v275
    %v475 = vunpack.c.l.b16 %v276
    %v476 = vunpack.c.l.b16 %v277
    %v477 = vunpack.c.l.b16 %v278
    %v478 = vunpack.c.l.b16 %v279
    %v479 = vunpack.c.l.b16 %v280
    %v480 = vunpack.c.l.b16 %v281
    %v481 = vunpack.c.l.b16 %v282
    %v482 = vunpack.c.l.b16 %v283
    %v483 = vunpack.c.l.b16 %v284
    %v484 = vunpack.c.l.b16 %v285
    %v485 = vunpack.c.l.b16 %v286
    %v486 = vunpack.c.l.b16 %v287
    %v487 = vunpack.c.l.b16 %v288
    %v488 = vunpack.c.l.b16 %v289
    %v489 = vunpack.c.l.b16 %v290
    %v490 = vunpack.c.l.b16 %v291
    %v491 = vunpack.c.l.b16 %v292
    %v492 = vunpack.c.l.b16 %v293
    %v493 = vunpack.c.l.b16 %v294
    %v494 = vunpack.c.l.b16 %v295
    %v495 = vunpack.c.l.b16 %v296
    %v496 = vunpack.c.l.b16 %v297
    %v497 = vunpack.c.l.b16 %v298
    %v498 = vunpack.c.l.b16 %v299
    %v499 = vunpack.c.l.b16 %v300
    %v500 = vunpack.c.l.b16 %v301
    %v501 = vunpack.c.l.b16 %v302
    %v502 = vpack.c.b16 %v407, %v406
    %v503 = vpack.c.b16 %v409, %v408
    %v504 = vpack.c.b16 %v411, %v410
    %v505 = vpack.c.b16 %v413, %v412
    %v506 = vpack.c.b16 %v415, %v414
    %v507 = vpack.c.b16 %v417, %v416
    %v508 = vpack.c.b16 %v419, %v418
    %v509 = vpack.c.b16 %v421, %v420
    %v510 = vpack.c.b16 %v423, %v422
    %v511 = vpack.c.b16 %v425, %v424
    %v512 = vpack.c.b16 %v427, %v426
    %v513 = vpack.c.b16 %v429, %v428
    %v514 = vpack.c.b16 %v431, %v430
    %v515 = vpack.c.b16 %v433, %v432
    %v516 = vpack.c.b16 %v435, %v434
    %v517 = vpack.c.b16 %v437, %v436
    %v518 = vpack.c.b16 %v439, %v438
    %v519 = vpack.c.b16 %v441, %v440
    %v520 = vpack.c.b16 %v443, %v442
    %v521 = vpack.c.b16 %v445, %v444
    %v522 = vpack.c.b16 %v447, %v446
    %v523 = vpack.c.b16 %v449, %v448
    %v524 = vpack.c.b16 %v451, %v450
    %v525 = vpack.c.b16 %v453, %v452
    %v526 = vpack.c.b16 %v455, %v454
    %v527 = vpack.c.b16 %v457, %v456
    %v528 = vpack.c.b16 %v459, %v458
    %v529 = vpack.c.b16 %v461, %v460
    %v530 = vpack.c.b16 %v463, %v462
    %v531 = vpack.c.b16 %v465, %v464
    %v532 = vpack.c.b16 %v467, %v466
    %v533 = vpack.c.b16 %v469, %v468
    %v534 = vpack.c.b16 %v471, %v470
    %v535 = vpack.c.b16 %v473, %v472
    %v536 = vpack.c.b16 %v475, %v474
    %v537 = vpack.c.b16 %v477, %v476
    %v538 = vpack.c.b16 %v479, %v478
    %v539 = vpack.c.b16 %v481, %v480
    %v540 = vpack.c.b16 %v483, %v482
    %v541 = vpack.c.b16 %v485, %v484
    %v542 = vpack.c.b16 %v487, %v486
    %v543 = vpack.c.b16 %v489, %v488
    %v544 = vpack.c.b16 %v491, %v490
    %v545 = vpack.c.b16 %v493, %v492
    %v546 = vpack.c.b16 %v495, %v494
    %v547 = vpack.c.b16 %v497, %v496
    %v548 = vpack.c.b16 %v499, %v498
    %v549 = vpack.c.b16 %v501, %v500
    %598 = vmatprep.subr.bf16.mxu0 0
    %599 = vmatpush1.bf16.msra.mxu0 %v509
    %600 = vmatprep.subr.bf16.mxu0 0
    %601 = vmatpush1.bf16.msra.mxu0 %v508
    %602 = vmatprep.subr.bf16.mxu0 0
    %603 = vmatpush1.bf16.msra.mxu0 %v507
    %604 = vmatprep.subr.bf16.mxu0 0
    %605 = vmatpush1.bf16.msra.mxu0 %v506
    %606 = vmatprep.subr.bf16.mxu0 0
    %607 = vmatpush1.bf16.msra.mxu0 %v505
    %608 = vmatprep.subr.bf16.mxu0 0
    %609 = vmatpush1.bf16.msra.mxu0 %v504
    %610 = vmatprep.subr.bf16.mxu0 0
    %611 = vmatpush1.bf16.msra.mxu0 %v503
    %612 = vmatprep.subr.bf16.mxu0 0
    %613 = vmatpush1.bf16.msra.mxu0 %v502
    %614 = vmatprep.subr.bf16.mxu0 0
    %615 = vmatpush2.bf16.msra.mxu0 %v517
    %616 = vmatprep.subr.bf16.mxu0 0
    %617 = vmatpush2.bf16.msra.mxu0 %v516
    %618 = vmatprep.subr.bf16.mxu0 0
    %619 = vmatpush2.bf16.msra.mxu0 %v515
    %620 = vmatprep.subr.bf16.mxu0 0
    %621 = vmatpush2.bf16.msra.mxu0 %v514
    %622 = vmatprep.subr.bf16.mxu0 0
    %623 = vmatpush2.bf16.msra.mxu0 %v513
    %624 = vmatprep.subr.bf16.mxu0 0
    %625 = vmatpush2.bf16.msra.mxu0 %v512
    %626 = vmatprep.subr.bf16.mxu0 0
    %627 = vmatpush2.bf16.msra.mxu0 %v511
    %628 = vmatprep.subr.bf16.mxu0 0
    %629 = vmatpush2.bf16.msra.mxu0 %v510
    %630 = vmatprep.mubr.bf16.mxu0 %v160
    %631 = vmatmul.mubr.bf16.gmra.mxu0 %v159
    %v632 = vpop.f32.mrf.mxu0
    %v633 = vadd.f32 %v308, %v632
    %v634 = vpop.f32.mrf.mxu0
    %v635 = vpop.f32.mrf.mxu0
    %v636 = vadd.f32 %v308, %v635
    %v637 = vpop.f32.mrf.mxu0
    %638 = vmatprep.mubr.bf16.mxu0 %v166
    %639 = vmatmul.mubr.bf16.gmra.mxu0 %v165
    %v640 = vpop.f32.mrf.mxu0
    %v641 = vadd.f32 %v308, %v640
    %v642 = vpop.f32.mrf.mxu0
    %v643 = vpop.f32.mrf.mxu0
    %v644 = vadd.f32 %v308, %v643
    %v645 = vpop.f32.mrf.mxu0
    %646 = vmatprep.mubr.bf16.mxu0 %v172
    %647 = vmatmul.mubr.bf16.gmra.mxu0 %v171
    %v648 = vpop.f32.mrf.mxu0
    %v649 = vadd.f32 %v308, %v648
    %v650 = vpop.f32.mrf.mxu0
    %v651 = vpop.f32.mrf.mxu0
    %v652 = vadd.f32 %v308, %v651
    %v653 = vpop.f32.mrf.mxu0
    %654 = vmatprep.mubr.bf16.mxu0 %v178
    %655 = vmatmul.mubr.bf16.gmra.mxu0 %v177
    %v656 = vpop.f32.mrf.mxu0
    %v657 = vadd.f32 %v308, %v656
    %v658 = vpop.f32.mrf.mxu0
    %v659 = vpop.f32.mrf.mxu0
    %v660 = vadd.f32 %v308, %v659
    %v661 = vpop.f32.mrf.mxu0
    %662 = vmatprep.mubr.bf16.mxu0 %v184
    %663 = vmatmul.mubr.bf16.gmra.mxu0 %v183
    %v664 = vpop.f32.mrf.mxu0
    %v665 = vadd.f32 %v308, %v664
    %v666 = vpop.f32.mrf.mxu0
    %v667 = vpop.f32.mrf.mxu0
    %v668 = vadd.f32 %v308, %v667
    %v669 = vpop.f32.mrf.mxu0
    %670 = vmatprep.mubr.bf16.mxu0 %v190
    %671 = vmatmul.mubr.bf16.gmra.mxu0 %v189
    %v672 = vpop.f32.mrf.mxu0
    %v673 = vadd.f32 %v308, %v672
    %v674 = vpop.f32.mrf.mxu0
    %v675 = vpop.f32.mrf.mxu0
    %v676 = vadd.f32 %v308, %v675
    %v677 = vpop.f32.mrf.mxu0
    %678 = vmatprep.mubr.bf16.mxu0 %v196
    %679 = vmatmul.mubr.bf16.gmra.mxu0 %v195
    %v680 = vpop.f32.mrf.mxu0
    %v681 = vadd.f32 %v308, %v680
    %v682 = vpop.f32.mrf.mxu0
    %v683 = vpop.f32.mrf.mxu0
    %v684 = vadd.f32 %v308, %v683
    %v685 = vpop.f32.mrf.mxu0
    %686 = vmatprep.mubr.bf16.mxu0 %v202
    %687 = vmatmul.mubr.bf16.gmra.mxu0 %v201
    %v688 = vpop.f32.mrf.mxu0
    %v689 = vadd.f32 %v308, %v688
    %v690 = vpop.f32.mrf.mxu0
    %v691 = vpop.f32.mrf.mxu0
    %v692 = vadd.f32 %v308, %v691
    %v693 = vpop.f32.mrf.mxu0
    %694 = vdwg.mxu0
    %695 = vmatprep.subr.bf16.mxu0 0
    %696 = vmatpush1.bf16.msra.mxu0 %v525
    %697 = vmatprep.subr.bf16.mxu0 0
    %698 = vmatpush1.bf16.msra.mxu0 %v524
    %699 = vmatprep.subr.bf16.mxu0 0
    %700 = vmatpush1.bf16.msra.mxu0 %v523
    %701 = vmatprep.subr.bf16.mxu0 0
    %702 = vmatpush1.bf16.msra.mxu0 %v522
    %703 = vmatprep.subr.bf16.mxu0 0
    %704 = vmatpush1.bf16.msra.mxu0 %v521
    %705 = vmatprep.subr.bf16.mxu0 0
    %706 = vmatpush1.bf16.msra.mxu0 %v520
    %707 = vmatprep.subr.bf16.mxu0 0
    %708 = vmatpush1.bf16.msra.mxu0 %v519
    %709 = vmatprep.subr.bf16.mxu0 0
    %710 = vmatpush1.bf16.msra.mxu0 %v518
    %711 = vmatprep.subr.bf16.mxu0 0
    %712 = vmatpush2.bf16.msra.mxu0 %v533
    %713 = vmatprep.subr.bf16.mxu0 0
    %714 = vmatpush2.bf16.msra.mxu0 %v532
    %715 = vmatprep.subr.bf16.mxu0 0
    %716 = vmatpush2.bf16.msra.mxu0 %v531
    %717 = vmatprep.subr.bf16.mxu0 0
    %718 = vmatpush2.bf16.msra.mxu0 %v530
    %719 = vmatprep.subr.bf16.mxu0 0
    %720 = vmatpush2.bf16.msra.mxu0 %v529
    %721 = vmatprep.subr.bf16.mxu0 0
    %722 = vmatpush2.bf16.msra.mxu0 %v528
    %723 = vmatprep.subr.bf16.mxu0 0
    %724 = vmatpush2.bf16.msra.mxu0 %v527
    %725 = vmatprep.subr.bf16.mxu0 0
    %726 = vmatpush2.bf16.msra.mxu0 %v526
    %727 = vmatprep.mubr.bf16.mxu0 %v162
    %728 = vmatmul.mubr.bf16.gmra.mxu0 %v161
    %v729 = vpop.f32.mrf.mxu0
    %v730 = vadd.f32 %v633, %v729
    %v731 = vpop.f32.mrf.mxu0
    %v732 = vpop.f32.mrf.mxu0
    %v733 = vadd.f32 %v636, %v732
    %v734 = vpop.f32.mrf.mxu0
    %735 = vmatprep.mubr.bf16.mxu0 %v168
    %736 = vmatmul.mubr.bf16.gmra.mxu0 %v167
    %v737 = vpop.f32.mrf.mxu0
    %v738 = vadd.f32 %v641, %v737
    %v739 = vpop.f32.mrf.mxu0
    %v740 = vpop.f32.mrf.mxu0
    %v741 = vadd.f32 %v644, %v740
    %v742 = vpop.f32.mrf.mxu0
    %743 = vmatprep.mubr.bf16.mxu0 %v174
    %744 = vmatmul.mubr.bf16.gmra.mxu0 %v173
    %v745 = vpop.f32.mrf.mxu0
    %v746 = vadd.f32 %v649, %v745
    %v747 = vpop.f32.mrf.mxu0
    %v748 = vpop.f32.mrf.mxu0
    %v749 = vadd.f32 %v652, %v748
    %v750 = vpop.f32.mrf.mxu0
    %751 = vmatprep.mubr.bf16.mxu0 %v180
    %752 = vmatmul.mubr.bf16.gmra.mxu0 %v179
    %v753 = vpop.f32.mrf.mxu0
    %v754 = vadd.f32 %v657, %v753
    %v755 = vpop.f32.mrf.mxu0
    %v756 = vpop.f32.mrf.mxu0
    %v757 = vadd.f32 %v660, %v756
    %v758 = vpop.f32.mrf.mxu0
    %759 = vmatprep.mubr.bf16.mxu0 %v186
    %760 = vmatmul.mubr.bf16.gmra.mxu0 %v185
    %v761 = vpop.f32.mrf.mxu0
    %v762 = vadd.f32 %v665, %v761
    %v763 = vpop.f32.mrf.mxu0
    %v764 = vpop.f32.mrf.mxu0
    %v765 = vadd.f32 %v668, %v764
    %v766 = vpop.f32.mrf.mxu0
    %767 = vmatprep.mubr.bf16.mxu0 %v192
    %768 = vmatmul.mubr.bf16.gmra.mxu0 %v191
    %v769 = vpop.f32.mrf.mxu0
    %v770 = vadd.f32 %v673, %v769
    %v771 = vpop.f32.mrf.mxu0
    %v772 = vpop.f32.mrf.mxu0
    %v773 = vadd.f32 %v676, %v772
    %v774 = vpop.f32.mrf.mxu0
    %775 = vmatprep.mubr.bf16.mxu0 %v198
    %776 = vmatmul.mubr.bf16.gmra.mxu0 %v197
    %v777 = vpop.f32.mrf.mxu0
    %v778 = vadd.f32 %v681, %v777
    %v779 = vpop.f32.mrf.mxu0
    %v780 = vpop.f32.mrf.mxu0
    %v781 = vadd.f32 %v684, %v780
    %v782 = vpop.f32.mrf.mxu0
    %783 = vmatprep.mubr.bf16.mxu0 %v204
    %784 = vmatmul.mubr.bf16.gmra.mxu0 %v203
    %v785 = vpop.f32.mrf.mxu0
    %v786 = vadd.f32 %v689, %v785
    %v787 = vpop.f32.mrf.mxu0
    %v788 = vpop.f32.mrf.mxu0
    %v789 = vadd.f32 %v692, %v788
    %v790 = vpop.f32.mrf.mxu0
    %791 = vdwg.mxu0
    %792 = vmatprep.subr.bf16.mxu0 0
    %793 = vmatpush1.bf16.msra.mxu0 %v541
    %794 = vmatprep.subr.bf16.mxu0 0
    %795 = vmatpush1.bf16.msra.mxu0 %v540
    %796 = vmatprep.subr.bf16.mxu0 0
    %797 = vmatpush1.bf16.msra.mxu0 %v539
    %798 = vmatprep.subr.bf16.mxu0 0
    %799 = vmatpush1.bf16.msra.mxu0 %v538
    %800 = vmatprep.subr.bf16.mxu0 0
    %801 = vmatpush1.bf16.msra.mxu0 %v537
    %802 = vmatprep.subr.bf16.mxu0 0
    %803 = vmatpush1.bf16.msra.mxu0 %v536
    %804 = vmatprep.subr.bf16.mxu0 0
    %805 = vmatpush1.bf16.msra.mxu0 %v535
    %806 = vmatprep.subr.bf16.mxu0 0
    %807 = vmatpush1.bf16.msra.mxu0 %v534
    %808 = vmatprep.subr.bf16.mxu0 0
    %809 = vmatpush2.bf16.msra.mxu0 %v549
    %810 = vmatprep.subr.bf16.mxu0 0
    %811 = vmatpush2.bf16.msra.mxu0 %v548
    %812 = vmatprep.subr.bf16.mxu0 0
    %813 = vmatpush2.bf16.msra.mxu0 %v547
    %814 = vmatprep.subr.bf16.mxu0 0
    %815 = vmatpush2.bf16.msra.mxu0 %v546
    %816 = vmatprep.subr.bf16.mxu0 0
    %817 = vmatpush2.bf16.msra.mxu0 %v545
    %818 = vmatprep.subr.bf16.mxu0 0
    %819 = vmatpush2.bf16.msra.mxu0 %v544
    %820 = vmatprep.subr.bf16.mxu0 0
    %821 = vmatpush2.bf16.msra.mxu0 %v543
    %822 = vmatprep.subr.bf16.mxu0 0
    %823 = vmatpush2.bf16.msra.mxu0 %v542
    %824 = vmatprep.mubr.bf16.mxu0 %v164
    %825 = vmatmul.mubr.bf16.gmra.mxu0 %v163
    %v826 = vpop.f32.mrf.mxu0
    %v827 = vadd.f32 %v730, %v826
    %v828 = vpop.f32.mrf.mxu0
    %v829 = vpop.f32.mrf.mxu0
    %v830 = vadd.f32 %v733, %v829
    %v831 = vpop.f32.mrf.mxu0
    %832 = vmatprep.mubr.bf16.mxu0 %v170
    %833 = vmatmul.mubr.bf16.gmra.mxu0 %v169
    %v834 = vpop.f32.mrf.mxu0
    %v835 = vadd.f32 %v738, %v834
    %v836 = vpop.f32.mrf.mxu0
    %v837 = vpop.f32.mrf.mxu0
    %v838 = vadd.f32 %v741, %v837
    %v839 = vpop.f32.mrf.mxu0
    %840 = vmatprep.mubr.bf16.mxu0 %v176
    %841 = vmatmul.mubr.bf16.gmra.mxu0 %v175
    %v842 = vpop.f32.mrf.mxu0
    %v843 = vadd.f32 %v746, %v842
    %v844 = vpop.f32.mrf.mxu0
    %v845 = vpop.f32.mrf.mxu0
    %v846 = vadd.f32 %v749, %v845
    %v847 = vpop.f32.mrf.mxu0
    %848 = vmatprep.mubr.bf16.mxu0 %v182
    %849 = vmatmul.mubr.bf16.gmra.mxu0 %v181
    %v850 = vpop.f32.mrf.mxu0
    %v851 = vadd.f32 %v754, %v850
    %v852 = vpop.f32.mrf.mxu0
    %v853 = vpop.f32.mrf.mxu0
    %v854 = vadd.f32 %v757, %v853
    %v855 = vpop.f32.mrf.mxu0
    %856 = vmatprep.mubr.bf16.mxu0 %v188
    %857 = vmatmul.mubr.bf16.gmra.mxu0 %v187
    %v858 = vpop.f32.mrf.mxu0
    %v859 = vadd.f32 %v762, %v858
    %v860 = vpop.f32.mrf.mxu0
    %v861 = vpop.f32.mrf.mxu0
    %v862 = vadd.f32 %v765, %v861
    %v863 = vpop.f32.mrf.mxu0
    %864 = vmatprep.mubr.bf16.mxu0 %v194
    %865 = vmatmul.mubr.bf16.gmra.mxu0 %v193
    %v866 = vpop.f32.mrf.mxu0
    %v867 = vadd.f32 %v770, %v866
    %v868 = vpop.f32.mrf.mxu0
    %v869 = vpop.f32.mrf.mxu0
    %v870 = vadd.f32 %v773, %v869
    %v871 = vpop.f32.mrf.mxu0
    %872 = vmatprep.mubr.bf16.mxu0 %v200
    %873 = vmatmul.mubr.bf16.gmra.mxu0 %v199
    %v874 = vpop.f32.mrf.mxu0
    %v875 = vadd.f32 %v778, %v874
    %v876 = vpop.f32.mrf.mxu0
    %v877 = vpop.f32.mrf.mxu0
    %v878 = vadd.f32 %v781, %v877
    %v879 = vpop.f32.mrf.mxu0
    %880 = vmatprep.mubr.bf16.mxu0 %v206
    %881 = vmatmul.mubr.bf16.gmra.mxu0 %v205
    %v882 = vpop.f32.mrf.mxu0
    %v883 = vadd.f32 %v786, %v882
    %v884 = vpop.f32.mrf.mxu0
    %v885 = vpop.f32.mrf.mxu0
    %v886 = vadd.f32 %v789, %v885
    %v887 = vpop.f32.mrf.mxu0
    %888 = vdwg.mxu0
    %v889 = vmax.f32 %v827, 0.0
    %v890 = vmax.f32 %v830, 0.0
    %v891 = vmax.f32 %v835, 0.0
    %v892 = vmax.f32 %v838, 0.0
    %v893 = vmax.f32 %v843, 0.0
    %v894 = vmax.f32 %v846, 0.0
    %v895 = vmax.f32 %v851, 0.0
    %v896 = vmax.f32 %v854, 0.0
    %v897 = vmax.f32 %v859, 0.0
    %v898 = vmax.f32 %v862, 0.0
    %v899 = vmax.f32 %v867, 0.0
    %v900 = vmax.f32 %v870, 0.0
    %v901 = vmax.f32 %v875, 0.0
    %v902 = vmax.f32 %v878, 0.0
    %v903 = vmax.f32 %v883, 0.0
    %v904 = vmax.f32 %v886, 0.0
    %v905 = vpack.c.bf16 %v890, %v889
    %v906 = vpack.c.bf16 %v892, %v891
    %v907 = vpack.c.bf16 %v894, %v893
    %v908 = vpack.c.bf16 %v896, %v895
    %v909 = vpack.c.bf16 %v898, %v897
    %v910 = vpack.c.bf16 %v900, %v899
    %v911 = vpack.c.bf16 %v902, %v901
    %v912 = vpack.c.bf16 %v904, %v903
    %v913 = vld [vmem:[#allocation7] sm:$0xf]
    %v914 = vld [vmem:[#allocation7 + $0x4] sm:$0xf]
    %v915 = vld [vmem:[#allocation7 + $0x8] sm:$0xf]
    %v916 = vld [vmem:[#allocation7 + $0xc] sm:$0xf]
    %v917 = vld [vmem:[#allocation7 + $0x10] sm:$0xf]
    %v918 = vld [vmem:[#allocation7 + $0x14] sm:$0xf]
    %v919 = vld [vmem:[#allocation7 + $0x18] sm:$0xf]
    %v920 = vld [vmem:[#allocation7 + $0x1c] sm:$0xf]
    %v921 = vld [vmem:[#allocation7 + $0x20] sm:$0xf]
    %v922 = vld [vmem:[#allocation7 + $0x24] sm:$0xf]
    %v923 = vld [vmem:[#allocation7 + $0x28] sm:$0xf]
    %v924 = vld [vmem:[#allocation7 + $0x2c] sm:$0xf]
    %v925 = vld [vmem:[#allocation7 + $0x30] sm:$0xf]
    %v926 = vld [vmem:[#allocation7 + $0x34] sm:$0xf]
    %v927 = vld [vmem:[#allocation7 + $0x38] sm:$0xf]
    %v928 = vld [vmem:[#allocation7 + $0x3c] sm:$0xf]
    %v929 = vld [vmem:[%s4] sm:$0x1]
    %v931 = vlaneseq
    %v932 = vshrl.u32 %v931, 7
    %v933 = vsub.s32 0, %v932
    %v934 = vrot.slane %v929, %v933
    %v952 = vunpack.c.l.b16 %v913
    %v953 = vunpack.c.l.b16 %v914
    %v954 = vunpack.c.l.b16 %v915
    %v955 = vunpack.c.l.b16 %v916
    %v956 = vunpack.c.l.b16 %v917
    %v957 = vunpack.c.l.b16 %v918
    %v958 = vunpack.c.l.b16 %v919
    %v959 = vunpack.c.l.b16 %v920
    %v960 = vunpack.c.l.b16 %v921
    %v961 = vunpack.c.l.b16 %v922
    %v962 = vunpack.c.l.b16 %v923
    %v963 = vunpack.c.l.b16 %v924
    %v964 = vunpack.c.l.b16 %v925
    %v965 = vunpack.c.l.b16 %v926
    %v966 = vunpack.c.l.b16 %v927
    %v967 = vunpack.c.l.b16 %v928
    %v968 = vpack.c.b16 %v953, %v952
    %v969 = vpack.c.b16 %v955, %v954
    %v970 = vpack.c.b16 %v957, %v956
    %v971 = vpack.c.b16 %v959, %v958
    %v972 = vpack.c.b16 %v961, %v960
    %v973 = vpack.c.b16 %v963, %v962
    %v974 = vpack.c.b16 %v965, %v964
    %v975 = vpack.c.b16 %v967, %v966
    %984 = vmatprep.subr.bf16.mxu0 0
    %985 = vmatpush1.bf16.msra.mxu0 %v975
    %986 = vmatprep.subr.bf16.mxu0 0
    %987 = vmatpush1.bf16.msra.mxu0 %v974
    %988 = vmatprep.subr.bf16.mxu0 0
    %989 = vmatpush1.bf16.msra.mxu0 %v973
    %990 = vmatprep.subr.bf16.mxu0 0
    %991 = vmatpush1.bf16.msra.mxu0 %v972
    %992 = vmatprep.subr.bf16.mxu0 0
    %993 = vmatpush1.bf16.msra.mxu0 %v971
    %994 = vmatprep.subr.bf16.mxu0 0
    %995 = vmatpush1.bf16.msra.mxu0 %v970
    %996 = vmatprep.subr.bf16.mxu0 0
    %997 = vmatpush1.bf16.msra.mxu0 %v969
    %998 = vmatprep.subr.bf16.mxu0 0
    %999 = vmatpush1.bf16.msra.mxu0 %v968
    %1000 = vmatprep.subr.bf16.mxu0 0
    %1001 = vmatpush2.bf16.msra.mxu0 0
    %1002 = vmatprep.subr.bf16.mxu0 0
    %1003 = vmatpush2.bf16.msra.mxu0 0
    %1004 = vmatprep.subr.bf16.mxu0 0
    %1005 = vmatpush2.bf16.msra.mxu0 0
    %1006 = vmatprep.subr.bf16.mxu0 0
    %1007 = vmatpush2.bf16.msra.mxu0 0
    %1008 = vmatprep.subr.bf16.mxu0 0
    %1009 = vmatpush2.bf16.msra.mxu0 0
    %1010 = vmatprep.subr.bf16.mxu0 0
    %1011 = vmatpush2.bf16.msra.mxu0 0
    %1012 = vmatprep.subr.bf16.mxu0 0
    %1013 = vmatpush2.bf16.msra.mxu0 0
    %1014 = vmatprep.subr.bf16.mxu0 0
    %1015 = vmatpush2.bf16.msra.mxu0 0
    %1016 = vmatprep.mubr.bf16.mxu0 0
    %1017 = vmatmul.mubr.bf16.gmra.mxu0 %v905
    %v1018 = vpop.f32.mrf.mxu0
    %v1019 = vadd.f32 %v934, %v1018
    %v1020 = vpop.f32.mrf.mxu0
    %v1021 = vpop.f32.mrf.mxu0
    %v1022 = vadd.f32 %v934, %v1021
    %v1023 = vpop.f32.mrf.mxu0
    %1024 = vmatprep.mubr.bf16.mxu0 0
    %1025 = vmatmul.mubr.bf16.gmra.mxu0 %v906
    %v1026 = vpop.f32.mrf.mxu0
    %v1027 = vadd.f32 %v934, %v1026
    %v1028 = vpop.f32.mrf.mxu0
    %v1029 = vpop.f32.mrf.mxu0
    %v1030 = vadd.f32 %v934, %v1029
    %v1031 = vpop.f32.mrf.mxu0
    %1032 = vmatprep.mubr.bf16.mxu0 0
    %1033 = vmatmul.mubr.bf16.gmra.mxu0 %v907
    %v1034 = vpop.f32.mrf.mxu0
    %v1035 = vadd.f32 %v934, %v1034
    %v1036 = vpop.f32.mrf.mxu0
    %v1037 = vpop.f32.mrf.mxu0
    %v1038 = vadd.f32 %v934, %v1037
    %v1039 = vpop.f32.mrf.mxu0
    %1040 = vmatprep.mubr.bf16.mxu0 0
    %1041 = vmatmul.mubr.bf16.gmra.mxu0 %v908
    %v1042 = vpop.f32.mrf.mxu0
    %v1043 = vadd.f32 %v934, %v1042
    %v1044 = vpop.f32.mrf.mxu0
    %v1045 = vpop.f32.mrf.mxu0
    %v1046 = vadd.f32 %v934, %v1045
    %v1047 = vpop.f32.mrf.mxu0
    %1048 = vmatprep.mubr.bf16.mxu0 0
    %1049 = vmatmul.mubr.bf16.gmra.mxu0 %v909
    %v1050 = vpop.f32.mrf.mxu0
    %v1051 = vadd.f32 %v934, %v1050
    %v1052 = vpop.f32.mrf.mxu0
    %v1053 = vpop.f32.mrf.mxu0
    %v1054 = vadd.f32 %v934, %v1053
    %v1055 = vpop.f32.mrf.mxu0
    %1056 = vmatprep.mubr.bf16.mxu0 0
    %1057 = vmatmul.mubr.bf16.gmra.mxu0 %v910
    %v1058 = vpop.f32.mrf.mxu0
    %v1059 = vadd.f32 %v934, %v1058
    %v1060 = vpop.f32.mrf.mxu0
    %v1061 = vpop.f32.mrf.mxu0
    %v1062 = vadd.f32 %v934, %v1061
    %v1063 = vpop.f32.mrf.mxu0
    %1064 = vmatprep.mubr.bf16.mxu0 0
    %1065 = vmatmul.mubr.bf16.gmra.mxu0 %v911
    %v1066 = vpop.f32.mrf.mxu0
    %v1067 = vadd.f32 %v934, %v1066
    %v1068 = vpop.f32.mrf.mxu0
    %v1069 = vpop.f32.mrf.mxu0
    %v1070 = vadd.f32 %v934, %v1069
    %v1071 = vpop.f32.mrf.mxu0
    %1072 = vmatprep.mubr.bf16.mxu0 0
    %1073 = vmatmul.mubr.bf16.gmra.mxu0 %v912
    %v1074 = vpop.f32.mrf.mxu0
    %v1075 = vadd.f32 %v934, %v1074
    %v1076 = vpop.f32.mrf.mxu0
    %v1077 = vpop.f32.mrf.mxu0
    %v1078 = vadd.f32 %v934, %v1077
    %v1079 = vpop.f32.mrf.mxu0
    %1080 = vdwg.mxu0
    %1081 = vmax.xlane.f32.xlu0 %v1019
    %v1082 = vpop.xlane.xlu0 %1081
    %1083 = vmax.xlane.f32.xlu0 %v1022
    %v1084 = vpop.xlane.xlu0 %1083
    %1085 = vmax.xlane.f32.xlu0 %v1027
    %v1086 = vpop.xlane.xlu0 %1085
    %1087 = vmax.xlane.f32.xlu0 %v1030
    %v1088 = vpop.xlane.xlu0 %1087
    %1089 = vmax.xlane.f32.xlu0 %v1035
    %v1090 = vpop.xlane.xlu0 %1089
    %1091 = vmax.xlane.f32.xlu0 %v1038
    %v1092 = vpop.xlane.xlu0 %1091
    %1093 = vmax.xlane.f32.xlu0 %v1043
    %v1094 = vpop.xlane.xlu0 %1093
    %1095 = vmax.xlane.f32.xlu0 %v1046
    %v1096 = vpop.xlane.xlu0 %1095
    %1097 = vmax.xlane.f32.xlu0 %v1051
    %v1098 = vpop.xlane.xlu0 %1097
    %1099 = vmax.xlane.f32.xlu0 %v1054
    %v1100 = vpop.xlane.xlu0 %1099
    %1101 = vmax.xlane.f32.xlu0 %v1059
    %v1102 = vpop.xlane.xlu0 %1101
    %1103 = vmax.xlane.f32.xlu0 %v1062
    %v1104 = vpop.xlane.xlu0 %1103
    %1105 = vmax.xlane.f32.xlu0 %v1067
    %v1106 = vpop.xlane.xlu0 %1105
    %1107 = vmax.xlane.f32.xlu0 %v1070
    %v1108 = vpop.xlane.xlu0 %1107
    %1109 = vmax.xlane.f32.xlu0 %v1075
    %v1110 = vpop.xlane.xlu0 %1109
    %1111 = vmax.xlane.f32.xlu0 %v1078
    %v1112 = vpop.xlane.xlu0 %1111
    %v1113 = vsub.f32 %v1019, %v1082
    %v1114 = vsub.f32 %v1022, %v1084
    %v1115 = vsub.f32 %v1027, %v1086
    %v1116 = vsub.f32 %v1030, %v1088
    %v1117 = vsub.f32 %v1035, %v1090
    %v1118 = vsub.f32 %v1038, %v1092
    %v1119 = vsub.f32 %v1043, %v1094
    %v1120 = vsub.f32 %v1046, %v1096
    %v1121 = vsub.f32 %v1051, %v1098
    %v1122 = vsub.f32 %v1054, %v1100
    %v1123 = vsub.f32 %v1059, %v1102
    %v1124 = vsub.f32 %v1062, %v1104
    %v1125 = vsub.f32 %v1067, %v1106
    %v1126 = vsub.f32 %v1070, %v1108
    %v1127 = vsub.f32 %v1075, %v1110
    %v1128 = vsub.f32 %v1078, %v1112
    %v1129 = vmul.f32 %v1113, 1.442695
    %v1130 = vpow.pop %v1129
    %v1131 = vmul.f32 %v1114, 1.442695
    %v1132 = vpow.pop %v1131
    %v1133 = vmul.f32 %v1115, 1.442695
    %v1134 = vpow.pop %v1133
    %v1135 = vmul.f32 %v1116, 1.442695
    %v1136 = vpow.pop %v1135
    %v1137 = vmul.f32 %v1117, 1.442695
    %v1138 = vpow.pop %v1137
    %v1139 = vmul.f32 %v1118, 1.442695
    %v1140 = vpow.pop %v1139
    %v1141 = vmul.f32 %v1119, 1.442695
    %v1142 = vpow.pop %v1141
    %v1143 = vmul.f32 %v1120, 1.442695
    %v1144 = vpow.pop %v1143
    %v1145 = vmul.f32 %v1121, 1.442695
    %v1146 = vpow.pop %v1145
    %v1147 = vmul.f32 %v1122, 1.442695
    %v1148 = vpow.pop %v1147
    %v1149 = vmul.f32 %v1123, 1.442695
    %v1150 = vpow.pop %v1149
    %v1151 = vmul.f32 %v1124, 1.442695
    %v1152 = vpow.pop %v1151
    %v1153 = vmul.f32 %v1125, 1.442695
    %v1154 = vpow.pop %v1153
    %v1155 = vmul.f32 %v1126, 1.442695
    %v1156 = vpow.pop %v1155
    %v1157 = vmul.f32 %v1127, 1.442695
    %v1158 = vpow.pop %v1157
    %v1159 = vmul.f32 %v1128, 1.442695
    %v1160 = vpow.pop %v1159
    %1161 = vadd.xlane.f32.xlu0 %v1130
    %v1162 = vpop.xlane.xlu0 %1161
    %1163 = vadd.xlane.f32.xlu0 %v1132
    %v1164 = vpop.xlane.xlu0 %1163
    %1165 = vadd.xlane.f32.xlu0 %v1134
    %v1166 = vpop.xlane.xlu0 %1165
    %1167 = vadd.xlane.f32.xlu0 %v1136
    %v1168 = vpop.xlane.xlu0 %1167
    %1169 = vadd.xlane.f32.xlu0 %v1138
    %v1170 = vpop.xlane.xlu0 %1169
    %1171 = vadd.xlane.f32.xlu0 %v1140
    %v1172 = vpop.xlane.xlu0 %1171
    %1173 = vadd.xlane.f32.xlu0 %v1142
    %v1174 = vpop.xlane.xlu0 %1173
    %1175 = vadd.xlane.f32.xlu0 %v1144
    %v1176 = vpop.xlane.xlu0 %1175
    %1177 = vadd.xlane.f32.xlu0 %v1146
    %v1178 = vpop.xlane.xlu0 %1177
    %1179 = vadd.xlane.f32.xlu0 %v1148
    %v1180 = vpop.xlane.xlu0 %1179
    %1181 = vadd.xlane.f32.xlu0 %v1150
    %v1182 = vpop.xlane.xlu0 %1181
    %1183 = vadd.xlane.f32.xlu0 %v1152
    %v1184 = vpop.xlane.xlu0 %1183
    %1185 = vadd.xlane.f32.xlu0 %v1154
    %v1186 = vpop.xlane.xlu0 %1185
    %1187 = vadd.xlane.f32.xlu0 %v1156
    %v1188 = vpop.xlane.xlu0 %1187
    %1189 = vadd.xlane.f32.xlu0 %v1158
    %v1190 = vpop.xlane.xlu0 %1189
    %1191 = vadd.xlane.f32.xlu0 %v1160
    %v1192 = vpop.xlane.xlu0 %1191
    %v1193 = vlog2.pop %v1162
    %v1194 = vmul.f32 %v1193, 0.6931472
    %v1195 = vlog2.pop %v1164
    %v1196 = vmul.f32 %v1195, 0.6931472
    %v1197 = vlog2.pop %v1166
    %v1198 = vmul.f32 %v1197, 0.6931472
    %v1199 = vlog2.pop %v1168
    %v1200 = vmul.f32 %v1199, 0.6931472
    %v1201 = vlog2.pop %v1170
    %v1202 = vmul.f32 %v1201, 0.6931472
    %v1203 = vlog2.pop %v1172
    %v1204 = vmul.f32 %v1203, 0.6931472
    %v1205 = vlog2.pop %v1174
    %v1206 = vmul.f32 %v1205, 0.6931472
    %v1207 = vlog2.pop %v1176
    %v1208 = vmul.f32 %v1207, 0.6931472
    %v1209 = vlog2.pop %v1178
    %v1210 = vmul.f32 %v1209, 0.6931472
    %v1211 = vlog2.pop %v1180
    %v1212 = vmul.f32 %v1211, 0.6931472
    %v1213 = vlog2.pop %v1182
    %v1214 = vmul.f32 %v1213, 0.6931472
    %v1215 = vlog2.pop %v1184
    %v1216 = vmul.f32 %v1215, 0.6931472
    %v1217 = vlog2.pop %v1186
    %v1218 = vmul.f32 %v1217, 0.6931472
    %v1219 = vlog2.pop %v1188
    %v1220 = vmul.f32 %v1219, 0.6931472
    %v1221 = vlog2.pop %v1190
    %v1222 = vmul.f32 %v1221, 0.6931472
    %v1223 = vlog2.pop %v1192
    %v1224 = vmul.f32 %v1223, 0.6931472
    %v1225 = vsub.f32 %v1113, %v1194
    %v1226 = vsub.f32 %v1114, %v1196
    %v1227 = vsub.f32 %v1115, %v1198
    %v1228 = vsub.f32 %v1116, %v1200
    %v1229 = vsub.f32 %v1117, %v1202
    %v1230 = vsub.f32 %v1118, %v1204
    %v1231 = vsub.f32 %v1119, %v1206
    %v1232 = vsub.f32 %v1120, %v1208
    %v1233 = vsub.f32 %v1121, %v1210
    %v1234 = vsub.f32 %v1122, %v1212
    %v1235 = vsub.f32 %v1123, %v1214
    %v1236 = vsub.f32 %v1124, %v1216
    %v1237 = vsub.f32 %v1125, %v1218
    %v1238 = vsub.f32 %v1126, %v1220
    %v1239 = vsub.f32 %v1127, %v1222
    %v1240 = vsub.f32 %v1128, %v1224
    %v1241 = vpack.c.bf16 %v1226, %v1225
    %v1242 = vpack.c.bf16 %v1228, %v1227
    %v1243 = vpack.c.bf16 %v1230, %v1229
    %v1244 = vpack.c.bf16 %v1232, %v1231
    %v1245 = vpack.c.bf16 %v1234, %v1233
    %v1246 = vpack.c.bf16 %v1236, %v1235
    %v1247 = vpack.c.bf16 %v1238, %v1237
    %v1248 = vpack.c.bf16 %v1240, %v1239
    %v1257 = vunpack.c.l.b16 %v1241
    %v1258 = vunpack.c.h.b16 %v1241
    %v1259 = vunpack.c.l.b16 %v1242
    %v1260 = vunpack.c.h.b16 %v1242
    %v1261 = vunpack.c.l.b16 %v1243
    %v1262 = vunpack.c.h.b16 %v1243
    %v1263 = vunpack.c.l.b16 %v1244
    %v1264 = vunpack.c.h.b16 %v1244
    %v1265 = vunpack.c.l.b16 %v1245
    %v1266 = vunpack.c.h.b16 %v1245
    %v1267 = vunpack.c.l.b16 %v1246
    %v1268 = vunpack.c.h.b16 %v1246
    %v1269 = vunpack.c.l.b16 %v1247
    %v1270 = vunpack.c.h.b16 %v1247
    %v1271 = vunpack.c.l.b16 %v1248
    %v1272 = vunpack.c.h.b16 %v1248
    %v1273 = vpack.c.b16 %v1257, %v1257
    %v1274 = vpack.c.b16 %v1258, %v1258
    %v1275 = vpack.c.b16 %v1259, %v1259
    %v1276 = vpack.c.b16 %v1260, %v1260
    %v1277 = vpack.c.b16 %v1261, %v1261
    %v1278 = vpack.c.b16 %v1262, %v1262
    %v1279 = vpack.c.b16 %v1263, %v1263
    %v1280 = vpack.c.b16 %v1264, %v1264
    %v1281 = vpack.c.b16 %v1265, %v1265
    %v1282 = vpack.c.b16 %v1266, %v1266
    %v1283 = vpack.c.b16 %v1267, %v1267
    %v1284 = vpack.c.b16 %v1268, %v1268
    %v1285 = vpack.c.b16 %v1269, %v1269
    %v1286 = vpack.c.b16 %v1270, %v1270
    %v1287 = vpack.c.b16 %v1271, %v1271
    %v1288 = vpack.c.b16 %v1272, %v1272
    %1305 = vst [vmem:[#allocation8] sm:$0xf] %v1273
    %1306 = vst [vmem:[#allocation8 + $0x4] sm:$0xf] %v1274
    %1307 = vst [vmem:[#allocation8 + $0x8] sm:$0xf] %v1275
    %1308 = vst [vmem:[#allocation8 + $0xc] sm:$0xf] %v1276
    %1309 = vst [vmem:[#allocation8 + $0x10] sm:$0xf] %v1277
    %1310 = vst [vmem:[#allocation8 + $0x14] sm:$0xf] %v1278
    %1311 = vst [vmem:[#allocation8 + $0x18] sm:$0xf] %v1279
    %1312 = vst [vmem:[#allocation8 + $0x1c] sm:$0xf] %v1280
    %1313 = vst [vmem:[#allocation8 + $0x20] sm:$0xf] %v1281
    %1314 = vst [vmem:[#allocation8 + $0x24] sm:$0xf] %v1282
    %1315 = vst [vmem:[#allocation8 + $0x28] sm:$0xf] %v1283
    %1316 = vst [vmem:[#allocation8 + $0x2c] sm:$0xf] %v1284
    %1317 = vst [vmem:[#allocation8 + $0x30] sm:$0xf] %v1285
    %1318 = vst [vmem:[#allocation8 + $0x34] sm:$0xf] %v1286
    %1319 = vst [vmem:[#allocation8 + $0x38] sm:$0xf] %v1287
    %1320 = vst [vmem:[#allocation8 + $0x3c] sm:$0xf] %v1288
    // Predicated region
    $region34: #{tpu_custom_call.1} parent=1 // pred_check
      _
    $region35: #{tpu_custom_call.1} parent=1 // pred_check_branch
      %1322 = sbr.rel (0) target = $region37
    $region36: #{tpu_custom_call.1} parent=1 // pred_region
      %s1324 = ssub.s32 1024, 1024
      %1325 = vsyncadd [#allocation4], %s1324
      %s1326 = sshll.u32 [#allocation8], 4
      %s1327 = int_to_ptr.vmem [resolvable:$true] %s1326
      %1332 = dma.vmem_to_hbm [thread:$0]  %s1327, 1024, %s5, [#allocation4], 64, 64, 4
    $region37: #{tpu_custom_call.1} parent=1 // pred_fallthru
      _
    // Predicated region
    $region38: #{tpu_custom_call.1} parent=1 // pred_check
      _
    $region39: #{tpu_custom_call.1} parent=1 // pred_check_branch
      %1334 = sbr.rel (0) target = $region41
    $region40: #{tpu_custom_call.1} parent=1 // pred_region
      %1335 = dma.done [#allocation4], 1024
    $region41: #{tpu_custom_call.1} parent=1 // pred_fallthru
      _
    %1336 = vsyncpa [#allocation3], 1
    %1337 = vsyncpa [#allocation6], 1
    %1338 = vsyncpa [#allocation4], 1

</llo_original>
